<compile_context>
chip_gen: v6e
topology: v6e:2x2x1
jax: 0.10.0
libtpu: 0.0.40
codegen_flags: <defaults>
</compile_context>

<pallas_src>
import math

import jax
import jax.numpy as jnp
from jax.experimental import pallas as pl
from jax.experimental.pallas import tpu as pltpu

HIDDEN = 50        # semantic hidden width (fixed by the torch module)
HIDDEN_PAD = 128   # lane-padded hidden width fed to the MXU/VPU


def _round_up(x, m):
    return (x + m - 1) // m * m


def _value_mlp_kernel(x_ref,
                      w1_ref, b1_ref,
                      w2_ref, b2_ref,
                      w3_ref, b3_ref,
                      w4_ref, b4_ref,
                      o_ref):
    """One batch tile of the fused 4-layer value MLP.

    Layers 1-3: MXU matmuls (f32 accumulation) + EUP tanh + VPU bias add.
    Final (HIDDEN -> 1) layer: N=1 matmul replaced by a VPU multiply and an
    XLU cross-lane reduce (padding lanes hold zeros so they are inert).
    """
    wdt = w1_ref.dtype
    x = x_ref[...]
    if x.dtype != wdt:
        x = x.astype(wdt)

    h = jnp.tanh(jnp.dot(x, w1_ref[...],
                         preferred_element_type=jnp.float32) + b1_ref[...])
    h = jnp.tanh(jnp.dot(h.astype(wdt), w2_ref[...],
                         preferred_element_type=jnp.float32) + b2_ref[...])
    h = jnp.tanh(jnp.dot(h.astype(wdt), w3_ref[...],
                         preferred_element_type=jnp.float32) + b3_ref[...])

    # Final Linear(50 -> 1): broadcast multiply + lane reduce, no MXU pass.
    out = jnp.sum(h * w4_ref[...].astype(jnp.float32), axis=-1, keepdims=True)
    out = out + b4_ref[...]
    o_ref[...] = out.astype(o_ref.dtype)


def _pad_params(params, weight_dtype):
    """Zero-pad hidden width 50 -> 128 and optionally cast weights (bf16).

    Zero padding is numerically inert: padded pre-activations are 0,
    tanh(0) = 0, and padded weight rows/columns contribute nothing.
    Biases stay f32 (bias add happens after the f32 accumulation).
    """
    f32 = jnp.float32
    pad_h = HIDDEN_PAD - HIDDEN

    w1 = jnp.pad(params["w1"].astype(f32), ((0, 0), (0, pad_h)))
    b1 = jnp.pad(params["b1"].astype(f32), ((0, 0), (0, pad_h)))
    w2 = jnp.pad(params["w2"].astype(f32), ((0, pad_h), (0, pad_h)))
    b2 = jnp.pad(params["b2"].astype(f32), ((0, 0), (0, pad_h)))
    w3 = jnp.pad(params["w3"].astype(f32), ((0, pad_h), (0, pad_h)))
    b3 = jnp.pad(params["b3"].astype(f32), ((0, 0), (0, pad_h)))
    # Final layer weight as a (1, HIDDEN_PAD) row for the VPU/XLU reduce.
    w4 = jnp.pad(params["w4"].astype(f32).reshape(1, HIDDEN),
                 ((0, 0), (0, pad_h)))
    b4 = params["b4"].astype(f32).reshape(1, 1)

    if weight_dtype is not None:
        w1, w2, w3, w4 = (w.astype(weight_dtype) for w in (w1, w2, w3, w4))
    return w1, b1, w2, b2, w3, b3, w4, b4


def value_network_forward(states, params, *, block_batch=512, weight_dtype=None):
    """ValueNetwork forward pass as a single fused, batch-tiled pallas_call.

    states: (batch, state_dim) float32
    params: dict with w1..w4 stored as (in, out) and b1..b4 as (1, out),
            hidden width 50 (torch-equivalent layout: y = x @ W + b).
    weight_dtype: None keeps f32 weights; jnp.bfloat16 enables the bf16 MXU
            path on v6e/v7x (f32 accumulation is kept either way).
    returns: (batch, 1) float32
    """
    batch, state_dim = states.shape
    w1, b1, w2, b2, w3, b3, w4, b4 = _pad_params(params, weight_dtype)

    # Batch tile: sublane-aligned (multiple of 8 for f32); streamed over the grid.
    tb = min(block_batch, _round_up(batch, 8))
    tb = _round_up(tb, 8)
    padded_batch = _round_up(batch, tb)
    if padded_batch != batch:
        states = jnp.pad(states, ((0, padded_batch - batch), (0, 0)))
    grid = (padded_batch // tb,)

    # Weights/biases: full-array blocks, constant index_map -> VMEM-resident,
    # DMA'd once. States/output: streamed per batch tile (pipelined).
    resident = lambda arr: pl.BlockSpec(arr.shape, lambda i: (0, 0))

    out = pl.pallas_call(
        _value_mlp_kernel,
        out_shape=jax.ShapeDtypeStruct((padded_batch, 1), jnp.float32),
        grid=grid,
        in_specs=[
            pl.BlockSpec((tb, state_dim), lambda i: (i, 0)),
            resident(w1), resident(b1),
            resident(w2), resident(b2),
            resident(w3), resident(b3),
            resident(w4), resident(b4),
        ],
        out_specs=pl.BlockSpec((tb, 1), lambda i: (i, 0)),
        compiler_params=pltpu.CompilerParams(
            dimension_semantics=("parallel",)),
    )(states, w1, b1, w2, b2, w3, b3, w4, b4)

    return out[:batch] if padded_batch != batch else out


def init_value_network_params(state_dim, key):
    """Deterministic init mirroring torch.nn.Linear's default
    U(-1/sqrt(fan_in), 1/sqrt(fan_in)) for both weight and bias."""
    dims = [(state_dim, HIDDEN), (HIDDEN, HIDDEN), (HIDDEN, HIDDEN), (HIDDEN, 1)]
    params = {}
    for i, (fan_in, fan_out) in enumerate(dims, start=1):
        key, kw, kb = jax.random.split(key, 3)
        bound = 1.0 / math.sqrt(fan_in)
        params[f"w{i}"] = jax.random.uniform(
            kw, (fan_in, fan_out), jnp.float32, minval=-bound, maxval=bound)
        params[f"b{i}"] = jax.random.uniform(
            kb, (1, fan_out), jnp.float32, minval=-bound, maxval=bound)
    return params


def _reference_forward(states, params):
    """Pure-JAX reference of the same forward pass (sanity check)."""
    h = states
    for i in range(1, 4):
        h = jnp.tanh(h @ params[f"w{i}"] + params[f"b{i}"])
    return h @ params["w4"] + params["b4"]


if __name__ == "__main__":
    key = jax.random.PRNGKey(0)
    k_params, k_states, k_big = jax.random.split(key, 3)

    state_dim = 32
    params = init_value_network_params(state_dim, k_params)

    # Small shape (single grid step), f32 weights: tight check vs. reference.
    states = jax.random.normal(k_states, (8, state_dim), jnp.float32)
    out = jax.block_until_ready(value_network_forward(states, params))
    ref = _reference_forward(states, params)
    assert out.shape == (8, 1), out.shape
    assert jnp.allclose(out, ref, atol=1e-4, rtol=1e-4), (
        "Pallas output diverges from pure-JAX reference (f32 path)")

    # Multi-tile grid + batch not a multiple of the tile (exercises the
    # streamed/pipelined path and wrapper-side batch padding).
    big = jax.random.normal(k_big, (200, state_dim), jnp.float32)
    out_big = jax.block_until_ready(
        value_network_forward(big, params, block_batch=64))
    ref_big = _reference_forward(big, params)
    assert out_big.shape == (200, 1), out_big.shape
    assert jnp.allclose(out_big, ref_big, atol=1e-4, rtol=1e-4), (
        "Pallas output diverges from pure-JAX reference (gridded f32 path)")

    # bf16-weight MXU fast path (v6e/v7x); looser tolerance due to bf16 cast.
    out_bf16 = jax.block_until_ready(
        value_network_forward(big, params, block_batch=64,
                              weight_dtype=jnp.bfloat16))
    assert jnp.allclose(out_bf16, ref_big, atol=5e-2, rtol=5e-2), (
        "Pallas bf16-weight path diverges too much from f32 reference")

    print("KERNEL_OK")
</pallas_src>

<mosaic_0001>
module attributes {stable_mosaic.version = 11 : i64} {
  func.func @_value_mlp_kernel(%arg0: i32, %arg1: memref<8x32xf32, #tpu.memory_space<vmem>>, %arg2: memref<32x128xf32, #tpu.memory_space<vmem>>, %arg3: memref<1x128xf32, #tpu.memory_space<vmem>>, %arg4: memref<128x128xf32, #tpu.memory_space<vmem>>, %arg5: memref<1x128xf32, #tpu.memory_space<vmem>>, %arg6: memref<128x128xf32, #tpu.memory_space<vmem>>, %arg7: memref<1x128xf32, #tpu.memory_space<vmem>>, %arg8: memref<1x128xf32, #tpu.memory_space<vmem>>, %arg9: memref<1x1xf32, #tpu.memory_space<vmem>>, %arg10: memref<8x1xf32, #tpu.memory_space<vmem>>) attributes {dimension_semantics = [#tpu.dimension_semantics<parallel>], iteration_bounds = array<i64: 1>, scalar_prefetch = 0 : i64, scratch_operands = 0 : i64, tpu.core_type = #tpu.core_type<tc>, window_params = [{transform_indices = @transform_0, window_bounds = array<i64: 8, 32>}, {pipeline_mode = #tpu.pipeline_mode<synchronous>, transform_indices = @transform_1, window_bounds = array<i64: 32, 128>}, {pipeline_mode = #tpu.pipeline_mode<synchronous>, transform_indices = @transform_2, window_bounds = array<i64: 1, 128>}, {pipeline_mode = #tpu.pipeline_mode<synchronous>, transform_indices = @transform_3, window_bounds = array<i64: 128, 128>}, {pipeline_mode = #tpu.pipeline_mode<synchronous>, transform_indices = @transform_4, window_bounds = array<i64: 1, 128>}, {pipeline_mode = #tpu.pipeline_mode<synchronous>, transform_indices = @transform_5, window_bounds = array<i64: 128, 128>}, {pipeline_mode = #tpu.pipeline_mode<synchronous>, transform_indices = @transform_6, window_bounds = array<i64: 1, 128>}, {pipeline_mode = #tpu.pipeline_mode<synchronous>, transform_indices = @transform_7, window_bounds = array<i64: 1, 128>}, {pipeline_mode = #tpu.pipeline_mode<synchronous>, transform_indices = @transform_8, window_bounds = array<i64: 1, 1>}, {transform_indices = @transform_9, window_bounds = array<i64: 8, 1>}]} {
    %c0 = arith.constant 0 : index
    %c0_0 = arith.constant 0 : index
    %0 = vector.load %arg1[%c0, %c0_0] : memref<8x32xf32, #tpu.memory_space<vmem>>, vector<8x32xf32>
    %c0_1 = arith.constant 0 : index
    %c0_2 = arith.constant 0 : index
    %1 = vector.load %arg2[%c0_1, %c0_2] : memref<32x128xf32, #tpu.memory_space<vmem>>, vector<32x128xf32>
    %cst = arith.constant dense<0.000000e+00> : vector<8x128xf32>
    %2 = tpu.matmul %0, %1, %cst {dimension_numbers = #tpu.dot_dimension_numbers<[1], [0], [0], [1], [0, 0, 1, 1], [], []>} : vector<8x32xf32>, vector<32x128xf32>, vector<8x128xf32> -> vector<8x128xf32>
    %c0_3 = arith.constant 0 : index
    %c0_4 = arith.constant 0 : index
    %3 = vector.load %arg3[%c0_3, %c0_4] : memref<1x128xf32, #tpu.memory_space<vmem>>, vector<1x128xf32>
    %4 = vector.broadcast %3 : vector<1x128xf32> to vector<8x128xf32>
    %5 = arith.addf %2, %4 : vector<8x128xf32>
    %6 = math.tanh %5 : vector<8x128xf32>
    %c0_5 = arith.constant 0 : index
    %c0_6 = arith.constant 0 : index
    %7 = vector.load %arg4[%c0_5, %c0_6] : memref<128x128xf32, #tpu.memory_space<vmem>>, vector<128x128xf32>
    %cst_7 = arith.constant dense<0.000000e+00> : vector<8x128xf32>
    %8 = tpu.matmul %6, %7, %cst_7 {dimension_numbers = #tpu.dot_dimension_numbers<[1], [0], [0], [1], [0, 0, 1, 1], [], []>} : vector<8x128xf32>, vector<128x128xf32>, vector<8x128xf32> -> vector<8x128xf32>
    %c0_8 = arith.constant 0 : index
    %c0_9 = arith.constant 0 : index
    %9 = vector.load %arg5[%c0_8, %c0_9] : memref<1x128xf32, #tpu.memory_space<vmem>>, vector<1x128xf32>
    %10 = vector.broadcast %9 : vector<1x128xf32> to vector<8x128xf32>
    %11 = arith.addf %8, %10 : vector<8x128xf32>
    %12 = math.tanh %11 : vector<8x128xf32>
    %c0_10 = arith.constant 0 : index
    %c0_11 = arith.constant 0 : index
    %13 = vector.load %arg6[%c0_10, %c0_11] : memref<128x128xf32, #tpu.memory_space<vmem>>, vector<128x128xf32>
    %cst_12 = arith.constant dense<0.000000e+00> : vector<8x128xf32>
    %14 = tpu.matmul %12, %13, %cst_12 {dimension_numbers = #tpu.dot_dimension_numbers<[1], [0], [0], [1], [0, 0, 1, 1], [], []>} : vector<8x128xf32>, vector<128x128xf32>, vector<8x128xf32> -> vector<8x128xf32>
    %c0_13 = arith.constant 0 : index
    %c0_14 = arith.constant 0 : index
    %15 = vector.load %arg7[%c0_13, %c0_14] : memref<1x128xf32, #tpu.memory_space<vmem>>, vector<1x128xf32>
    %16 = vector.broadcast %15 : vector<1x128xf32> to vector<8x128xf32>
    %17 = arith.addf %14, %16 : vector<8x128xf32>
    %18 = math.tanh %17 : vector<8x128xf32>
    %c0_15 = arith.constant 0 : index
    %c0_16 = arith.constant 0 : index
    %19 = vector.load %arg8[%c0_15, %c0_16] : memref<1x128xf32, #tpu.memory_space<vmem>>, vector<1x128xf32>
    %20 = vector.broadcast %19 : vector<1x128xf32> to vector<8x128xf32>
    %21 = arith.mulf %18, %20 : vector<8x128xf32>
    %cst_17 = arith.constant dense<0.000000e+00> : vector<8xf32>
    %22 = vector.multi_reduction <add>, %21, %cst_17 [1] : vector<8x128xf32> to vector<8xf32>
    %23 = vector.shape_cast %22 : vector<8xf32> to vector<8x1xf32>
    %c0_18 = arith.constant 0 : index
    %c0_19 = arith.constant 0 : index
    %24 = vector.load %arg9[%c0_18, %c0_19] : memref<1x1xf32, #tpu.memory_space<vmem>>, vector<1x1xf32>
    %25 = vector.broadcast %24 : vector<1x1xf32> to vector<8x1xf32>
    %26 = arith.addf %23, %25 : vector<8x1xf32>
    %c0_20 = arith.constant 0 : index
    %c0_21 = arith.constant 0 : index
    %27 = vector.load %arg10[%c0_20, %c0_21] : memref<8x1xf32, #tpu.memory_space<vmem>>, vector<8x1xf32>
    tpu.vector_store %arg10[%c0_20, %c0_21], %26 {strides = array<i32>} : memref<8x1xf32, #tpu.memory_space<vmem>>, vector<8x1xf32>,
    return
  }
  func.func @transform_0(%arg0: i32) -> (i32, i32) {
    %c0_i32 = arith.constant 0 : i32
    %c0_i32_0 = arith.constant 0 : i32
    return %arg0, %c0_i32 : i32, i32
  }
  func.func @transform_1(%arg0: i32) -> (i32, i32) {
    %c0_i32 = arith.constant 0 : i32
    %c0_i32_0 = arith.constant 0 : i32
    %c0_i32_1 = arith.constant 0 : i32
    return %c0_i32, %c0_i32_0 : i32, i32
  }
  func.func @transform_2(%arg0: i32) -> (i32, i32) {
    %c0_i32 = arith.constant 0 : i32
    %c0_i32_0 = arith.constant 0 : i32
    %c0_i32_1 = arith.constant 0 : i32
    return %c0_i32, %c0_i32_0 : i32, i32
  }
  func.func @transform_3(%arg0: i32) -> (i32, i32) {
    %c0_i32 = arith.constant 0 : i32
    %c0_i32_0 = arith.constant 0 : i32
    %c0_i32_1 = arith.constant 0 : i32
    return %c0_i32, %c0_i32_0 : i32, i32
  }
  func.func @transform_4(%arg0: i32) -> (i32, i32) {
    %c0_i32 = arith.constant 0 : i32
    %c0_i32_0 = arith.constant 0 : i32
    %c0_i32_1 = arith.constant 0 : i32
    return %c0_i32, %c0_i32_0 : i32, i32
  }
  func.func @transform_5(%arg0: i32) -> (i32, i32) {
    %c0_i32 = arith.constant 0 : i32
    %c0_i32_0 = arith.constant 0 : i32
    %c0_i32_1 = arith.constant 0 : i32
    return %c0_i32, %c0_i32_0 : i32, i32
  }
  func.func @transform_6(%arg0: i32) -> (i32, i32) {
    %c0_i32 = arith.constant 0 : i32
    %c0_i32_0 = arith.constant 0 : i32
    %c0_i32_1 = arith.constant 0 : i32
    return %c0_i32, %c0_i32_0 : i32, i32
  }
  func.func @transform_7(%arg0: i32) -> (i32, i32) {
    %c0_i32 = arith.constant 0 : i32
    %c0_i32_0 = arith.constant 0 : i32
    %c0_i32_1 = arith.constant 0 : i32
    return %c0_i32, %c0_i32_0 : i32, i32
  }
  func.func @transform_8(%arg0: i32) -> (i32, i32) {
    %c0_i32 = arith.constant 0 : i32
    %c0_i32_0 = arith.constant 0 : i32
    %c0_i32_1 = arith.constant 0 : i32
    return %c0_i32, %c0_i32_0 : i32, i32
  }
  func.func @transform_9(%arg0: i32) -> (i32, i32) {
    %c0_i32 = arith.constant 0 : i32
    %c0_i32_0 = arith.constant 0 : i32
    return %arg0, %c0_i32 : i32, i32
  }
}

</mosaic_0001>

<llo_original>
// kernel: tpu_custom_call.1
$region0: #{tpu_custom_call.1}
  #allocation0 [shape = 'u32[]', space=smem, size = 0x4, offset = 0x4, fixed_abs, tag = 'smem constant byte address 0x4 - core index']
  #allocation1 [shape = 'u32[144,128]{1,0:T(1,128)}', space=vmem, size = 0x12000, scoped, tag = 'internal scratch']
  #allocation2 [shape = 'f32[1,1]{1,0:T(1,128)S(1)}', space=vmem, size = 0x200, scoped, tag = 'scoped memory for tpu_custom_call.1']
  %s0 = inlined_call_operand.hbm [shape: f32[8,32], index: 0, kind: input, shape index: {}]
  %s1 = inlined_call_operand.hbm [shape: f32[32,128], index: 1, kind: input, shape index: {}]
  %s2 = inlined_call_operand.vmem [shape: f32[1,128], index: 2, kind: input, shape index: {}]
  %s3 = inlined_call_operand.hbm [shape: f32[128,128], index: 3, kind: input, shape index: {}]
  %s4 = inlined_call_operand.vmem [shape: f32[1,128], index: 4, kind: input, shape index: {}]
  %s5 = inlined_call_operand.hbm [shape: f32[128,128], index: 5, kind: input, shape index: {}]
  %s6 = inlined_call_operand.vmem [shape: f32[1,128], index: 6, kind: input, shape index: {}]
  %s7 = inlined_call_operand.vmem [shape: f32[1,128], index: 7, kind: input, shape index: {}]
  %s8 = inlined_call_operand.<no memory space> [shape: f32[1,1], index: 8, kind: input, shape index: {}]
  %s9 = inlined_call_operand.vmem [shape: f32[8,1], index: 9, kind: output, shape index: {}]
  %s10 = sld [smem:[#allocation0]]
  $region62: #{tpu_custom_call.1} parent=0
    _
  %s12 = ssub.s32 1, %s10
  %s13 = scalar_select 0, %s12, %s10
  %v14 = vstv %s8
  %15 = vst [vmem:[#allocation2] sm:$0x1] %v14
  $region1: #{tpu_custom_call.1} parent=0
    #allocation3 [shape = 'u8[4096]{0}', space=vmem, size = 0x1000, scoped, tag = 'input window, operand 0, single buffered']
    #allocation4 [shape = 's32[1]{0}', space=sflag, size = 0x4, scoped, tag = 'scoped memory for tpu_custom_call.1']
    #allocation5 [shape = 'u8[16384]{0}', space=vmem, size = 0x4000, scoped, tag = 'input window, operand 1, single buffered']
    #allocation6 [shape = 's32[1]{0}', space=sflag, size = 0x4, scoped, tag = 'scoped memory for tpu_custom_call.1']
    #allocation7 [shape = 'u8[65536]{0}', space=vmem, size = 0x10000, scoped, tag = 'input window, operand 3, single buffered']
    #allocation8 [shape = 'u8[65536]{0}', space=vmem, size = 0x10000, scoped, tag = 'input window, operand 5, single buffered']
    #allocation9 [shape = 's32[1]{0}', space=sflag, size = 0x4, scoped, tag = 'scoped memory for tpu_custom_call.1']
    %16 = vsyncpa [#allocation4], 0
    %17 = vsyncpa [#allocation6], 0
    %18 = vsyncpa [#allocation9], 0
    // Predicated region
    $region2: #{tpu_custom_call.1} parent=1 // pred_check
      _
    $region3: #{tpu_custom_call.1} parent=1 // pred_check_branch
      %20 = sbr.rel (0) target = $region5
    $region4: #{tpu_custom_call.1} parent=1 // pred_region
      %s22 = ssub.s32 128, 128
      %23 = vsyncadd [#allocation4], %s22
      %s25 = sshll.u32 [#allocation3], 4
      %s26 = int_to_ptr.vmem [resolvable:$true] %s25
      %28 = dma.hbm_to_vmem [thread:$0]  %s0, 128, %s26, [#allocation4]
    $region5: #{tpu_custom_call.1} parent=1 // pred_fallthru
      _
    // Predicated region
    $region6: #{tpu_custom_call.1} parent=1 // pred_check
      _
    $region7: #{tpu_custom_call.1} parent=1 // pred_check_branch
      %30 = sbr.rel (0) target = $region9
    $region8: #{tpu_custom_call.1} parent=1 // pred_region
      %s32 = ssub.s32 512, 512
      %33 = vsyncadd [#allocation6], %s32
      %s34 = sshll.u32 [#allocation5], 4
      %s35 = int_to_ptr.vmem [resolvable:$true] %s34
      %40 = dma.hbm_to_vmem [thread:$0]  %s1, 512, %s35, [#allocation6], 128, 128, 8
    $region9: #{tpu_custom_call.1} parent=1 // pred_fallthru
      _
    // Predicated region
    $region10: #{tpu_custom_call.1} parent=1 // pred_check
      _
    $region11: #{tpu_custom_call.1} parent=1 // pred_check_branch
      %42 = sbr.rel (0) target = $region13
    $region12: #{tpu_custom_call.1} parent=1 // pred_region
      _
    $region13: #{tpu_custom_call.1} parent=1 // pred_fallthru
      _
    // Predicated region
    $region14: #{tpu_custom_call.1} parent=1 // pred_check
      _
    $region15: #{tpu_custom_call.1} parent=1 // pred_check_branch
      %44 = sbr.rel (0) target = $region17
    $region16: #{tpu_custom_call.1} parent=1 // pred_region
      %s46 = ssub.s32 2048, 2048
      %47 = vsyncadd [#allocation6], %s46
      %s48 = sshll.u32 [#allocation7], 4
      %s49 = int_to_ptr.vmem [resolvable:$true] %s48
      %54 = dma.hbm_to_vmem [thread:$0]  %s3, 2048, %s49, [#allocation6], 128, 128, 8
    $region17: #{tpu_custom_call.1} parent=1 // pred_fallthru
      _
    // Predicated region
    $region18: #{tpu_custom_call.1} parent=1 // pred_check
      _
    $region19: #{tpu_custom_call.1} parent=1 // pred_check_branch
      %56 = sbr.rel (0) target = $region21
    $region20: #{tpu_custom_call.1} parent=1 // pred_region
      _
    $region21: #{tpu_custom_call.1} parent=1 // pred_fallthru
      _
    // Predicated region
    $region22: #{tpu_custom_call.1} parent=1 // pred_check
      _
    $region23: #{tpu_custom_call.1} parent=1 // pred_check_branch
      %58 = sbr.rel (0) target = $region25
    $region24: #{tpu_custom_call.1} parent=1 // pred_region
      %s60 = ssub.s32 2048, 2048
      %61 = vsyncadd [#allocation9], %s60
      %s62 = sshll.u32 [#allocation8], 4
      %s63 = int_to_ptr.vmem [resolvable:$true] %s62
      %68 = dma.hbm_to_vmem [thread:$0]  %s5, 2048, %s63, [#allocation9], 128, 128, 8
    $region25: #{tpu_custom_call.1} parent=1 // pred_fallthru
      _
    // Predicated region
    $region26: #{tpu_custom_call.1} parent=1 // pred_check
      _
    $region27: #{tpu_custom_call.1} parent=1 // pred_check_branch
      %70 = sbr.rel (0) target = $region29
    $region28: #{tpu_custom_call.1} parent=1 // pred_region
      _
    $region29: #{tpu_custom_call.1} parent=1 // pred_fallthru
      _
    // Predicated region
    $region30: #{tpu_custom_call.1} parent=1 // pred_check
      _
    $region31: #{tpu_custom_call.1} parent=1 // pred_check_branch
      %72 = sbr.rel (0) target = $region33
    $region32: #{tpu_custom_call.1} parent=1 // pred_region
      _
    $region33: #{tpu_custom_call.1} parent=1 // pred_fallthru
      _
    // Predicated region
    $region34: #{tpu_custom_call.1} parent=1 // pred_check
      _
    $region35: #{tpu_custom_call.1} parent=1 // pred_check_branch
      %74 = sbr.rel (0) target = $region37
    $region36: #{tpu_custom_call.1} parent=1 // pred_region
      _
    $region37: #{tpu_custom_call.1} parent=1 // pred_fallthru
      _
    // Predicated region
    $region38: #{tpu_custom_call.1} parent=1 // pred_check
      _
    $region39: #{tpu_custom_call.1} parent=1 // pred_check_branch
      %76 = sbr.rel (0) target = $region41
    $region40: #{tpu_custom_call.1} parent=1 // pred_region
      %77 = dma.done [#allocation4], 128
    $region41: #{tpu_custom_call.1} parent=1 // pred_fallthru
      _
    // Predicated region
    $region42: #{tpu_custom_call.1} parent=1 // pred_check
      _
    $region43: #{tpu_custom_call.1} parent=1 // pred_check_branch
      %79 = sbr.rel (0) target = $region45
    $region44: #{tpu_custom_call.1} parent=1 // pred_region
      %80 = dma.done [#allocation6], 512
    $region45: #{tpu_custom_call.1} parent=1 // pred_fallthru
      _
    // Predicated region
    $region46: #{tpu_custom_call.1} parent=1 // pred_check
      _
    $region47: #{tpu_custom_call.1} parent=1 // pred_check_branch
      %82 = sbr.rel (0) target = $region49
    $region48: #{tpu_custom_call.1} parent=1 // pred_region
      %83 = dma.done [#allocation6], 2048
    $region49: #{tpu_custom_call.1} parent=1 // pred_fallthru
      _
    // Predicated region
    $region50: #{tpu_custom_call.1} parent=1 // pred_check
      _
    $region51: #{tpu_custom_call.1} parent=1 // pred_check_branch
      %85 = sbr.rel (0) target = $region53
    $region52: #{tpu_custom_call.1} parent=1 // pred_region
      %86 = dma.done [#allocation9], 2048
    $region53: #{tpu_custom_call.1} parent=1 // pred_fallthru
      _
    %v87 = vld [vmem:[#allocation3] sm:$0xff]
    %v88 = vld [vmem:[#allocation5] sm:$0xff]
    %v89 = vld [vmem:[#allocation5 + $0x8] sm:$0xff]
    %v90 = vld [vmem:[#allocation5 + $0x10] sm:$0xff]
    %v91 = vld [vmem:[#allocation5 + $0x18] sm:$0xff]
    %v92 = vld [vmem:[%s2] sm:$0x1]
    %v94 = vlaneseq
    %v95 = vshrl.u32 %v94, 7
    %v96 = vsub.s32 0, %v95
    %v97 = vrot.slane %v92, %v96
    %vm99 = vcmask 261120
    %v101 = vsel %vm99, %v87, 0
    %103 = vmatprep.subr.mxu0 0.0
    %104 = vmatpush1.msra.mxu0 0.0
    %105 = vmatprep.subr.mxu0 0.0
    %106 = vmatpush1.msra.mxu0 0.0
    %107 = vmatprep.subr.mxu0 0.0
    %108 = vmatpush1.msra.mxu0 0.0
    %109 = vmatprep.subr.mxu0 0.0
    %110 = vmatpush1.msra.mxu0 0.0
    %111 = vmatprep.subr.mxu0 0.0
    %112 = vmatpush1.msra.mxu0 0.0
    %113 = vmatprep.subr.mxu0 0.0
    %114 = vmatpush1.msra.mxu0 0.0
    %115 = vmatprep.subr.mxu0 0.0
    %116 = vmatpush1.msra.mxu0 0.0
    %117 = vmatprep.subr.mxu0 0.0
    %118 = vmatpush1.msra.mxu0 0.0
    %119 = vmatprep.subr.mxu0 0.0
    %120 = vmatpush1.msra.mxu0 0.0
    %121 = vmatprep.subr.mxu0 0.0
    %122 = vmatpush1.msra.mxu0 0.0
    %123 = vmatprep.subr.mxu0 0.0
    %124 = vmatpush1.msra.mxu0 0.0
    %125 = vmatprep.subr.mxu0 0.0
    %126 = vmatpush1.msra.mxu0 0.0
    %127 = vmatprep.subr.mxu0 0.0
    %128 = vmatpush1.msra.mxu0 %v91
    %129 = vmatprep.subr.mxu0 0.0
    %130 = vmatpush1.msra.mxu0 %v90
    %131 = vmatprep.subr.mxu0 0.0
    %132 = vmatpush1.msra.mxu0 %v89
    %133 = vmatprep.subr.mxu0 0.0
    %134 = vmatpush1.msra.mxu0 %v88
    %135 = vmatprep.subr.mxu0 0.0
    %136 = vmatpush2.msra.mxu0 0.0
    %137 = vmatprep.subr.mxu0 0.0
    %138 = vmatpush2.msra.mxu0 0.0
    %139 = vmatprep.subr.mxu0 0.0
    %140 = vmatpush2.msra.mxu0 0.0
    %141 = vmatprep.subr.mxu0 0.0
    %142 = vmatpush2.msra.mxu0 0.0
    %143 = vmatprep.subr.mxu0 0.0
    %144 = vmatpush2.msra.mxu0 0.0
    %145 = vmatprep.subr.mxu0 0.0
    %146 = vmatpush2.msra.mxu0 0.0
    %147 = vmatprep.subr.mxu0 0.0
    %148 = vmatpush2.msra.mxu0 0.0
    %149 = vmatprep.subr.mxu0 0.0
    %150 = vmatpush2.msra.mxu0 0.0
    %151 = vmatprep.subr.mxu0 0.0
    %152 = vmatpush2.msra.mxu0 0.0
    %153 = vmatprep.subr.mxu0 0.0
    %154 = vmatpush2.msra.mxu0 0.0
    %155 = vmatprep.subr.mxu0 0.0
    %156 = vmatpush2.msra.mxu0 0.0
    %157 = vmatprep.subr.mxu0 0.0
    %158 = vmatpush2.msra.mxu0 0.0
    %159 = vmatprep.subr.mxu0 0.0
    %160 = vmatpush2.msra.mxu0 0.0
    %161 = vmatprep.subr.mxu0 0.0
    %162 = vmatpush2.msra.mxu0 0.0
    %163 = vmatprep.subr.mxu0 0.0
    %164 = vmatpush2.msra.mxu0 0.0
    %165 = vmatprep.subr.mxu0 0.0
    %166 = vmatpush2.msra.mxu0 0.0
    %167 = vmatprep.mubr.f32.mxu0 0.0
    %168 = vmatmul.mubr.f32.gmra.mxu0 %v101
    %v169 = vpop.f32.mrf.mxu0
    %v170 = vadd.f32 %v97, %v169
    %v171 = vpop.f32.mrf.mxu0
    %172 = vdwg.mxu0
    %v173 = vtanh.pop %v170
    %v174 = vld [vmem:[#allocation7] sm:$0xff]
    %v175 = vld [vmem:[#allocation7 + $0x8] sm:$0xff]
    %v176 = vld [vmem:[#allocation7 + $0x10] sm:$0xff]
    %v177 = vld [vmem:[#allocation7 + $0x18] sm:$0xff]
    %v178 = vld [vmem:[#allocation7 + $0x20] sm:$0xff]
    %v179 = vld [vmem:[#allocation7 + $0x28] sm:$0xff]
    %v180 = vld [vmem:[#allocation7 + $0x30] sm:$0xff]
    %v181 = vld [vmem:[#allocation7 + $0x38] sm:$0xff]
    %v182 = vld [vmem:[#allocation7 + $0x40] sm:$0xff]
    %v183 = vld [vmem:[#allocation7 + $0x48] sm:$0xff]
    %v184 = vld [vmem:[#allocation7 + $0x50] sm:$0xff]
    %v185 = vld [vmem:[#allocation7 + $0x58] sm:$0xff]
    %v186 = vld [vmem:[#allocation7 + $0x60] sm:$0xff]
    %v187 = vld [vmem:[#allocation7 + $0x68] sm:$0xff]
    %v188 = vld [vmem:[#allocation7 + $0x70] sm:$0xff]
    %v189 = vld [vmem:[#allocation7 + $0x78] sm:$0xff]
    %v190 = vld [vmem:[%s4] sm:$0x1]
    %v192 = vlaneseq
    %v193 = vshrl.u32 %v192, 7
    %v194 = vsub.s32 0, %v193
    %v195 = vrot.slane %v190, %v194
    %197 = vmatprep.subr.mxu0 0.0
    %198 = vmatpush1.msra.mxu0 %v189
    %199 = vmatprep.subr.mxu0 0.0
    %200 = vmatpush1.msra.mxu0 %v188
    %201 = vmatprep.subr.mxu0 0.0
    %202 = vmatpush1.msra.mxu0 %v187
    %203 = vmatprep.subr.mxu0 0.0
    %204 = vmatpush1.msra.mxu0 %v186
    %205 = vmatprep.subr.mxu0 0.0
    %206 = vmatpush1.msra.mxu0 %v185
    %207 = vmatprep.subr.mxu0 0.0
    %208 = vmatpush1.msra.mxu0 %v184
    %209 = vmatprep.subr.mxu0 0.0
    %210 = vmatpush1.msra.mxu0 %v183
    %211 = vmatprep.subr.mxu0 0.0
    %212 = vmatpush1.msra.mxu0 %v182
    %213 = vmatprep.subr.mxu0 0.0
    %214 = vmatpush1.msra.mxu0 %v181
    %215 = vmatprep.subr.mxu0 0.0
    %216 = vmatpush1.msra.mxu0 %v180
    %217 = vmatprep.subr.mxu0 0.0
    %218 = vmatpush1.msra.mxu0 %v179
    %219 = vmatprep.subr.mxu0 0.0
    %220 = vmatpush1.msra.mxu0 %v178
    %221 = vmatprep.subr.mxu0 0.0
    %222 = vmatpush1.msra.mxu0 %v177
    %223 = vmatprep.subr.mxu0 0.0
    %224 = vmatpush1.msra.mxu0 %v176
    %225 = vmatprep.subr.mxu0 0.0
    %226 = vmatpush1.msra.mxu0 %v175
    %227 = vmatprep.subr.mxu0 0.0
    %228 = vmatpush1.msra.mxu0 %v174
    %229 = vmatprep.subr.mxu0 0.0
    %230 = vmatpush2.msra.mxu0 0.0
    %231 = vmatprep.subr.mxu0 0.0
    %232 = vmatpush2.msra.mxu0 0.0
    %233 = vmatprep.subr.mxu0 0.0
    %234 = vmatpush2.msra.mxu0 0.0
    %235 = vmatprep.subr.mxu0 0.0
    %236 = vmatpush2.msra.mxu0 0.0
    %237 = vmatprep.subr.mxu0 0.0
    %238 = vmatpush2.msra.mxu0 0.0
    %239 = vmatprep.subr.mxu0 0.0
    %240 = vmatpush2.msra.mxu0 0.0
    %241 = vmatprep.subr.mxu0 0.0
    %242 = vmatpush2.msra.mxu0 0.0
    %243 = vmatprep.subr.mxu0 0.0
    %244 = vmatpush2.msra.mxu0 0.0
    %245 = vmatprep.subr.mxu0 0.0
    %246 = vmatpush2.msra.mxu0 0.0
    %247 = vmatprep.subr.mxu0 0.0
    %248 = vmatpush2.msra.mxu0 0.0
    %249 = vmatprep.subr.mxu0 0.0
    %250 = vmatpush2.msra.mxu0 0.0
    %251 = vmatprep.subr.mxu0 0.0
    %252 = vmatpush2.msra.mxu0 0.0
    %253 = vmatprep.subr.mxu0 0.0
    %254 = vmatpush2.msra.mxu0 0.0
    %255 = vmatprep.subr.mxu0 0.0
    %256 = vmatpush2.msra.mxu0 0.0
    %257 = vmatprep.subr.mxu0 0.0
    %258 = vmatpush2.msra.mxu0 0.0
    %259 = vmatprep.subr.mxu0 0.0
    %260 = vmatpush2.msra.mxu0 0.0
    %261 = vmatprep.mubr.f32.mxu0 0.0
    %262 = vmatmul.mubr.f32.gmra.mxu0 %v173
    %v263 = vpop.f32.mrf.mxu0
    %v264 = vadd.f32 %v195, %v263
    %v265 = vpop.f32.mrf.mxu0
    %266 = vdwg.mxu0
    %v267 = vtanh.pop %v264
    %v268 = vld [vmem:[#allocation8] sm:$0xff]
    %v269 = vld [vmem:[#allocation8 + $0x8] sm:$0xff]
    %v270 = vld [vmem:[#allocation8 + $0x10] sm:$0xff]
    %v271 = vld [vmem:[#allocation8 + $0x18] sm:$0xff]
    %v272 = vld [vmem:[#allocation8 + $0x20] sm:$0xff]
    %v273 = vld [vmem:[#allocation8 + $0x28] sm:$0xff]
    %v274 = vld [vmem:[#allocation8 + $0x30] sm:$0xff]
    %v275 = vld [vmem:[#allocation8 + $0x38] sm:$0xff]
    %v276 = vld [vmem:[#allocation8 + $0x40] sm:$0xff]
    %v277 = vld [vmem:[#allocation8 + $0x48] sm:$0xff]
    %v278 = vld [vmem:[#allocation8 + $0x50] sm:$0xff]
    %v279 = vld [vmem:[#allocation8 + $0x58] sm:$0xff]
    %v280 = vld [vmem:[#allocation8 + $0x60] sm:$0xff]
    %v281 = vld [vmem:[#allocation8 + $0x68] sm:$0xff]
    %v282 = vld [vmem:[#allocation8 + $0x70] sm:$0xff]
    %v283 = vld [vmem:[#allocation8 + $0x78] sm:$0xff]
    %v284 = vld [vmem:[%s6] sm:$0x1]
    %v286 = vlaneseq
    %v287 = vshrl.u32 %v286, 7
    %v288 = vsub.s32 0, %v287
    %v289 = vrot.slane %v284, %v288
    %291 = vmatprep.subr.mxu0 0.0
    %292 = vmatpush1.msra.mxu0 %v283
    %293 = vmatprep.subr.mxu0 0.0
    %294 = vmatpush1.msra.mxu0 %v282
    %295 = vmatprep.subr.mxu0 0.0
    %296 = vmatpush1.msra.mxu0 %v281
    %297 = vmatprep.subr.mxu0 0.0
    %298 = vmatpush1.msra.mxu0 %v280
    %299 = vmatprep.subr.mxu0 0.0
    %300 = vmatpush1.msra.mxu0 %v279
    %301 = vmatprep.subr.mxu0 0.0
    %302 = vmatpush1.msra.mxu0 %v278
    %303 = vmatprep.subr.mxu0 0.0
    %304 = vmatpush1.msra.mxu0 %v277
    %305 = vmatprep.subr.mxu0 0.0
    %306 = vmatpush1.msra.mxu0 %v276
    %307 = vmatprep.subr.mxu0 0.0
    %308 = vmatpush1.msra.mxu0 %v275
    %309 = vmatprep.subr.mxu0 0.0
    %310 = vmatpush1.msra.mxu0 %v274
    %311 = vmatprep.subr.mxu0 0.0
    %312 = vmatpush1.msra.mxu0 %v273
    %313 = vmatprep.subr.mxu0 0.0
    %314 = vmatpush1.msra.mxu0 %v272
    %315 = vmatprep.subr.mxu0 0.0
    %316 = vmatpush1.msra.mxu0 %v271
    %317 = vmatprep.subr.mxu0 0.0
    %318 = vmatpush1.msra.mxu0 %v270
    %319 = vmatprep.subr.mxu0 0.0
    %320 = vmatpush1.msra.mxu0 %v269
    %321 = vmatprep.subr.mxu0 0.0
    %322 = vmatpush1.msra.mxu0 %v268
    %323 = vmatprep.subr.mxu0 0.0
    %324 = vmatpush2.msra.mxu0 0.0
    %325 = vmatprep.subr.mxu0 0.0
    %326 = vmatpush2.msra.mxu0 0.0
    %327 = vmatprep.subr.mxu0 0.0
    %328 = vmatpush2.msra.mxu0 0.0
    %329 = vmatprep.subr.mxu0 0.0
    %330 = vmatpush2.msra.mxu0 0.0
    %331 = vmatprep.subr.mxu0 0.0
    %332 = vmatpush2.msra.mxu0 0.0
    %333 = vmatprep.subr.mxu0 0.0
    %334 = vmatpush2.msra.mxu0 0.0
    %335 = vmatprep.subr.mxu0 0.0
    %336 = vmatpush2.msra.mxu0 0.0
    %337 = vmatprep.subr.mxu0 0.0
    %338 = vmatpush2.msra.mxu0 0.0
    %339 = vmatprep.subr.mxu0 0.0
    %340 = vmatpush2.msra.mxu0 0.0
    %341 = vmatprep.subr.mxu0 0.0
    %342 = vmatpush2.msra.mxu0 0.0
    %343 = vmatprep.subr.mxu0 0.0
    %344 = vmatpush2.msra.mxu0 0.0
    %345 = vmatprep.subr.mxu0 0.0
    %346 = vmatpush2.msra.mxu0 0.0
    %347 = vmatprep.subr.mxu0 0.0
    %348 = vmatpush2.msra.mxu0 0.0
    %349 = vmatprep.subr.mxu0 0.0
    %350 = vmatpush2.msra.mxu0 0.0
    %351 = vmatprep.subr.mxu0 0.0
    %352 = vmatpush2.msra.mxu0 0.0
    %353 = vmatprep.subr.mxu0 0.0
    %354 = vmatpush2.msra.mxu0 0.0
    %355 = vmatprep.mubr.f32.mxu0 0.0
    %356 = vmatmul.mubr.f32.gmra.mxu0 %v267
    %v357 = vpop.f32.mrf.mxu0
    %v358 = vadd.f32 %v289, %v357
    %v359 = vpop.f32.mrf.mxu0
    %360 = vdwg.mxu0
    %v361 = vtanh.pop %v358
    %v362 = vld [vmem:[%s7] sm:$0x1]
    %v364 = vlaneseq
    %v365 = vshrl.u32 %v364, 7
    %v366 = vsub.s32 0, %v365
    %v367 = vrot.slane %v362, %v366
    %v369 = vmul.f32 %v361, %v367
    %370 = vadd.xlane.f32.xlu0 %v369
    %v371 = vpop.xlane.xlu0 %370
    %v372 = vld [vmem:[#allocation2] sm:$0x1]
    %v374 = vlaneseq
    %v375 = vshrl.u32 %v374, 7
    %v376 = vsub.s32 0, %v375
    %v377 = vrot.slane %v372, %v376
    %v379 = vadd.f32 %v371, %v377
    %vm380 = vcmask 7168
    %381 = vst.msk [vmem:[%s9] sm:$0xff] %vm380, %v379
    // Predicated region
    $region54: #{tpu_custom_call.1} parent=1 // pred_check
      _
    $region55: #{tpu_custom_call.1} parent=1 // pred_check_branch
      %383 = sbr.rel (0) target = $region57
    $region56: #{tpu_custom_call.1} parent=1 // pred_region
      _
    $region57: #{tpu_custom_call.1} parent=1 // pred_fallthru
      _
    // Predicated region
    $region58: #{tpu_custom_call.1} parent=1 // pred_check
      _
    $region59: #{tpu_custom_call.1} parent=1 // pred_check_branch
      %385 = sbr.rel (0) target = $region61
    $region60: #{tpu_custom_call.1} parent=1 // pred_region
      _
    $region61: #{tpu_custom_call.1} parent=1 // pred_fallthru
      _
    %386 = vsyncpa [#allocation4], 1
    %387 = vsyncpa [#allocation6], 1
    %388 = vsyncpa [#allocation9], 1

</llo_original>
